<compile_context>
chip_gen: v5e
topology: v5e:2x2
jax: 0.10.0
libtpu: 0.0.40
codegen_flags: <defaults>
</compile_context>

<pallas_src>
import jax
import jax.numpy as jnp
from jax.experimental import pallas as pl
from jax.experimental.pallas import tpu as pltpu


# ----------------------------------------------------------------------------
# Kernels
# ----------------------------------------------------------------------------
def _mote_mlp_stream_kernel(x_ref, wup_ref, bup_ref, wdn_ref, bdn_ref, o_ref,
                            acc_ref):
    """One (row-tile, hidden-chunk) step of the fused-expert MLP.

    x_ref   : (tm, Dp)  input tokens (constant block across hidden axis)
    wup_ref : (Dp, th)  chunk of fused up-projection  ([in, out])
    bup_ref : (1, th)   chunk of fused up-projection bias
    wdn_ref : (th, Dp)  chunk of fused down-projection ([in, out])
    bdn_ref : (1, Dp)   fused down-projection bias (grid-invariant)
    o_ref   : (tm, Dp)  output tokens (constant block across hidden axis)
    acc_ref : (tm, Dp)  f32 accumulator scratch
    """
    h_idx = pl.program_id(1)

    @pl.when(h_idx == 0)
    def _():
        acc_ref[...] = jnp.zeros_like(acc_ref)

    x = x_ref[...]
    h = jnp.dot(x, wup_ref[...], preferred_element_type=jnp.float32)
    h = h + bup_ref[...].astype(jnp.float32)
    # QuickGELU (exact, elementwise in H -> chunk-local). Kept in f32; the EUP
    # slot is free filler whenever the MXU dominates.
    h = h * jax.nn.sigmoid(1.702 * h)
    acc_ref[...] += jnp.dot(h.astype(wdn_ref.dtype), wdn_ref[...],
                            preferred_element_type=jnp.float32)

    @pl.when(h_idx == pl.num_programs(1) - 1)
    def _():
        o_ref[...] = (acc_ref[...]
                      + bdn_ref[...].astype(jnp.float32)).astype(o_ref.dtype)


def _mote_mlp_resident_kernel(x_ref, wup_ref, bup_ref, wdn_ref, bdn_ref,
                              o_ref):
    """Row-tile step with fully VMEM-resident fused weights (no H streaming)."""
    x = x_ref[...]
    h = jnp.dot(x, wup_ref[...], preferred_element_type=jnp.float32)
    h = h + bup_ref[...].astype(jnp.float32)
    h = h * jax.nn.sigmoid(1.702 * h)
    y = jnp.dot(h.astype(wdn_ref.dtype), wdn_ref[...],
                preferred_element_type=jnp.float32)
    o_ref[...] = (y + bdn_ref[...].astype(jnp.float32)).astype(o_ref.dtype)


# ----------------------------------------------------------------------------
# Wrapper
# ----------------------------------------------------------------------------
def _round_up(x, m):
    return ((x + m - 1) // m) * m


def _vmem_capacity_bytes():
    """Generation-aware per-core VMEM capacity (128 MiB v5e/v6e, 64 MiB v7x)."""
    try:
        cap = int(pltpu.get_tpu_info().vmem_capacity_bytes)
        if cap > 0:
            return cap
    except Exception:
        pass
    return 64 * 1024 * 1024  # conservative fallback (v7x-sized)


def mote_mlp(x, w_up, b_up, w_dn, b_dn, *, tm=256, th=512,
             force_stream=False):
    """Fused-expert MLP.  x: (N, D); w_up: (D, H); b_up: (H,);
    w_dn: (H, D); b_dn: (D,).  Weight layout is [in, out]."""
    N, D = x.shape
    H = w_up.shape[1]

    # Lane-align both feature dims (exact: zero pads contribute nothing).
    D_pad = _round_up(D, 128)
    H_pad = _round_up(H, 128)

    # Row tile: multiple of 8 sublanes, no larger than (padded) N.
    tm = max(8, _round_up(min(tm, max(N, 1)), 8))
    # Keep >=2 row tiles when the token count allows (v7x: 2 TensorCores).
    if N >= 16 and _round_up(N, tm) // tm < 2:
        tm = max(8, _round_up((N + 1) // 2, 8))
    N_pad = _round_up(N, tm)

    xb = jnp.dtype(x.dtype).itemsize
    wb = jnp.dtype(w_up.dtype).itemsize
    ob = xb
    cap = _vmem_capacity_bytes()

    # --- pad operands ---------------------------------------------------------
    if N_pad != N or D_pad != D:
        x = jnp.pad(x, ((0, N_pad - N), (0, D_pad - D)))
    if D_pad != D or H_pad != H:
        w_up = jnp.pad(w_up, ((0, D_pad - D), (0, H_pad - H)))
        w_dn = jnp.pad(w_dn, ((0, H_pad - H), (0, D_pad - D)))
        b_up = jnp.pad(b_up, (0, H_pad - H))
        b_dn = jnp.pad(b_dn, (0, D_pad - D))
    b_up2 = b_up.reshape(1, H_pad)
    b_dn2 = b_dn.reshape(1, D_pad)

    weight_bytes_once = (D_pad * H_pad + H_pad + H_pad * D_pad + D_pad) * wb
    flops = int(4 * N_pad * D_pad * H_pad)                  # two matmuls
    transcendentals = int(N_pad * H_pad)

    # --- resident-weights fast path ------------------------------------------
    # Budget with double-buffering of every block (worst case).
    resident_est = (2 * weight_bytes_once
                    + 2 * tm * D_pad * xb        # x tile
                    + 2 * tm * D_pad * ob)       # out tile
    use_resident = (not force_stream) and resident_est <= int(0.35 * cap)

    if use_resident:
        vmem_limit = int(min(cap, max(int(resident_est * 1.4), 32 << 20)))
        grid = (N_pad // tm,)
        out = pl.pallas_call(
            _mote_mlp_resident_kernel,
            out_shape=jax.ShapeDtypeStruct((N_pad, D_pad), x.dtype),
            grid_spec=pltpu.PrefetchScalarGridSpec(
                num_scalar_prefetch=0,
                grid=grid,
                in_specs=[
                    pl.BlockSpec((tm, D_pad), lambda i: (i, 0)),    # x tile
                    pl.BlockSpec((D_pad, H_pad), lambda i: (0, 0)),  # W_up
                    pl.BlockSpec((1, H_pad), lambda i: (0, 0)),      # b_up
                    pl.BlockSpec((H_pad, D_pad), lambda i: (0, 0)),  # W_dn
                    pl.BlockSpec((1, D_pad), lambda i: (0, 0)),      # b_dn
                ],
                out_specs=pl.BlockSpec((tm, D_pad), lambda i: (i, 0)),
            ),
            compiler_params=pltpu.CompilerParams(
                dimension_semantics=("parallel",),
                vmem_limit_bytes=vmem_limit,
            ),
            cost_estimate=pl.CostEstimate(
                flops=flops,
                transcendentals=transcendentals,
                bytes_accessed=int(2 * N_pad * D_pad * xb
                                   + weight_bytes_once),
            ),
        )(x, w_up, b_up2, w_dn, b_dn2)
        return out[:N, :D]

    # --- streamed H-chunk path ------------------------------------------------
    # Hidden-chunk tile: multiple of 128 lanes that divides H_pad.
    th = max(128, min(_round_up(th, 128), H_pad))
    while H_pad % th != 0:
        th -= 128

    def _stream_est(tm_, th_):
        return (2 * tm_ * D_pad * xb            # x tile (double-buffered)
                + 2 * tm_ * D_pad * ob          # out tile
                + tm_ * D_pad * 4               # f32 accumulator
                + 2 * (D_pad * th_ + th_ + th_ * D_pad + D_pad) * wb)

    budget = int(0.8 * cap)
    # Shrink th first: th has zero effect on total HBM weight traffic.
    while _stream_est(tm, th) > budget and th > 128:
        th -= 128
        while H_pad % th != 0:
            th -= 128
    # Only then shrink the row tile.
    while _stream_est(tm, th) > budget and tm > 8:
        tm = max(8, _round_up(tm // 2, 8))
    N_pad2 = _round_up(N, tm)
    if N_pad2 != N_pad:
        x = x[:N_pad2] if N_pad2 < N_pad else jnp.pad(
            x, ((0, N_pad2 - N_pad), (0, 0)))
        N_pad = N_pad2

    nh = H_pad // th
    est = _stream_est(tm, th)
    vmem_limit = int(min(cap, max(int(est * 1.4), 32 << 20)))

    grid = (N_pad // tm, nh)
    out = pl.pallas_call(
        _mote_mlp_stream_kernel,
        out_shape=jax.ShapeDtypeStruct((N_pad, D_pad), x.dtype),
        grid_spec=pltpu.PrefetchScalarGridSpec(
            num_scalar_prefetch=0,
            grid=grid,
            in_specs=[
                pl.BlockSpec((tm, D_pad), lambda i, h: (i, 0)),   # x row tile
                pl.BlockSpec((D_pad, th), lambda i, h: (0, h)),   # W_up chunk
                pl.BlockSpec((1, th), lambda i, h: (0, h)),       # b_up chunk
                pl.BlockSpec((th, D_pad), lambda i, h: (h, 0)),   # W_dn chunk
                pl.BlockSpec((1, D_pad), lambda i, h: (0, 0)),    # b_dn
            ],
            out_specs=pl.BlockSpec((tm, D_pad), lambda i, h: (i, 0)),
            scratch_shapes=[pltpu.VMEM((tm, D_pad), jnp.float32)],
        ),
        compiler_params=pltpu.CompilerParams(
            dimension_semantics=("parallel", "arbitrary"),
            vmem_limit_bytes=vmem_limit,
        ),
        cost_estimate=pl.CostEstimate(
            flops=flops,
            transcendentals=transcendentals,
            bytes_accessed=int(2 * N_pad * D_pad * xb
                               + weight_bytes_once * (N_pad // tm)),
        ),
    )(x, w_up, b_up2, w_dn, b_dn2)
    return out[:N, :D]


# ----------------------------------------------------------------------------
# Parameter glue (expert fusion) + module-level forward
# ----------------------------------------------------------------------------
def init_mote_params(key, d_model, num_experts=4, dtype=jnp.float32):
    """Per-expert Linear params, stacked (PyTorch layout: weight = (out, in))."""
    hidden = 4 * d_model
    ku, kbu, kd, kbd = jax.random.split(key, 4)
    w_up = jax.random.uniform(ku, (num_experts, hidden, d_model), dtype,
                              -1.0, 1.0) / (d_model ** 0.5)
    b_up = jax.random.uniform(kbu, (num_experts, hidden), dtype,
                              -1.0, 1.0) / (d_model ** 0.5)
    w_dn = jax.random.uniform(kd, (num_experts, d_model, hidden), dtype,
                              -1.0, 1.0) / (hidden ** 0.5)
    b_dn = jax.random.uniform(kbd, (num_experts, d_model), dtype,
                              -1.0, 1.0) / (hidden ** 0.5)
    # mote_fusion_weight is initialized to zeros in the module (-> uniform mix)
    fusion_logits = jnp.zeros((num_experts,), dtype)
    return (w_up, b_up, w_dn, b_dn), fusion_logits


def fuse_experts(stacked_params, fusion_logits, compute_dtype=jnp.bfloat16):
    """mote_experts_fusion(evaluation=True): softmax-weighted expert mix.

    Single stacked einsum, emitted directly in the kernel's [in, out] layout,
    cast to the MXU compute dtype (default bf16)."""
    w_up, b_up, w_dn, b_dn = stacked_params
    mix = jax.nn.softmax(fusion_logits.astype(jnp.float32))
    wu_t = jnp.einsum('e,eoi->io', mix, w_up.astype(jnp.float32))  # (D, H)
    bu = jnp.einsum('e,eo->o', mix, b_up.astype(jnp.float32))
    wd_t = jnp.einsum('e,eoi->io', mix, w_dn.astype(jnp.float32))  # (H, D)
    bd = jnp.einsum('e,eo->o', mix, b_dn.astype(jnp.float32))
    if compute_dtype is not None:
        wu_t, bu, wd_t, bd = (a.astype(compute_dtype)
                              for a in (wu_t, bu, wd_t, bd))
    return wu_t, bu, wd_t, bd


def mote_forward(x, stacked_params, fusion_logits, *, tm=256, th=512,
                 compute_dtype=jnp.bfloat16, force_stream=False):
    """Eval-mode MoTE forward.  x: (..., d_model).

    compute_dtype=bf16 (default) feeds the MXU bf16 on all generations while
    accumulating in f32 inside the kernel; pass jnp.float32 for bit-tight f32.
    """
    wu_t, bu, wd_t, bd = fuse_experts(stacked_params, fusion_logits,
                                      compute_dtype)
    orig_shape = x.shape
    d = orig_shape[-1]
    x2 = x.reshape(-1, d)
    if compute_dtype is not None:
        x2 = x2.astype(compute_dtype)
    y = mote_mlp(x2, wu_t, bu, wd_t, bd, tm=tm, th=th,
                 force_stream=force_stream)
    return y.reshape(orig_shape).astype(x.dtype)


def _reference(x2, stacked_params, fusion_logits):
    wu_t, bu, wd_t, bd = fuse_experts(stacked_params, fusion_logits,
                                      compute_dtype=jnp.float32)
    h = x2 @ wu_t + bu
    h = h * jax.nn.sigmoid(1.702 * h)
    return h @ wd_t + bd


if __name__ == "__main__":
    num_experts = 4
    key = jax.random.PRNGKey(0)
    k_param, k_x1, k_x2, k_param3, k_x3 = jax.random.split(key, 5)

    # --- Case 1: default bf16 compute, resident-weights path (d_model=32) ----
    d_model = 32
    stacked_params, fusion_logits = init_mote_params(k_param, d_model,
                                                     num_experts)
    x1 = jax.random.normal(k_x1, (2, 8, d_model), dtype=jnp.float32)
    y1 = jax.block_until_ready(mote_forward(x1, stacked_params, fusion_logits))
    y1_ref = _reference(x1.reshape(-1, d_model), stacked_params,
                        fusion_logits).reshape(x1.shape)
    assert jnp.allclose(y1, y1_ref, atol=5e-2, rtol=5e-2), "mismatch (case 1)"

    # --- Case 2: f32 compute, ragged token count (N=14), tight tolerance -----
    x2 = jax.random.normal(k_x2, (2, 7, d_model), dtype=jnp.float32)
    y2 = jax.block_until_ready(
        mote_forward(x2, stacked_params, fusion_logits,
                     compute_dtype=jnp.float32))
    y2_ref = _reference(x2.reshape(-1, d_model), stacked_params,
                        fusion_logits).reshape(x2.shape)
    assert jnp.allclose(y2, y2_ref, atol=1e-5, rtol=1e-5), "mismatch (case 2)"

    # --- Case 3: streamed H-chunk path (forced), multiple hidden chunks ------
    d_model3 = 64                       # H = 256 -> two th=128 chunks
    stacked3, logits3 = init_mote_params(k_param3, d_model3, num_experts)
    x3 = jax.random.normal(k_x3, (2, 9, d_model3), dtype=jnp.float32)
    y3 = jax.block_until_ready(
        mote_forward(x3, stacked3, logits3, tm=8, th=128,
                     compute_dtype=jnp.float32, force_stream=True))
    y3_ref = _reference(x3.reshape(-1, d_model3), stacked3,
                        logits3).reshape(x3.shape)
    assert jnp.allclose(y3, y3_ref, atol=1e-5, rtol=1e-5), "mismatch (case 3)"

    print("KERNEL_OK")
</pallas_src>

<mosaic_0001>
module attributes {stable_mosaic.version = 11 : i64} {
  func.func @_mote_mlp_resident_kernel(%arg0: i32, %arg1: memref<8x128xbf16, #tpu.memory_space<vmem>>, %arg2: memref<128x128xbf16, #tpu.memory_space<vmem>>, %arg3: memref<1x128xbf16, #tpu.memory_space<vmem>>, %arg4: memref<128x128xbf16, #tpu.memory_space<vmem>>, %arg5: memref<1x128xbf16, #tpu.memory_space<vmem>>, %arg6: memref<8x128xbf16, #tpu.memory_space<vmem>>) attributes {dimension_semantics = [#tpu.dimension_semantics<parallel>], iteration_bounds = array<i64: 2>, scalar_prefetch = 0 : i64, scratch_operands = 0 : i64, tpu.core_type = #tpu.core_type<tc>, window_params = [{transform_indices = @transform_0, window_bounds = array<i64: 8, 128>}, {pipeline_mode = #tpu.pipeline_mode<synchronous>, transform_indices = @transform_1, window_bounds = array<i64: 128, 128>}, {pipeline_mode = #tpu.pipeline_mode<synchronous>, transform_indices = @transform_2, window_bounds = array<i64: 1, 128>}, {pipeline_mode = #tpu.pipeline_mode<synchronous>, transform_indices = @transform_3, window_bounds = array<i64: 128, 128>}, {pipeline_mode = #tpu.pipeline_mode<synchronous>, transform_indices = @transform_4, window_bounds = array<i64: 1, 128>}, {transform_indices = @transform_5, window_bounds = array<i64: 8, 128>}]} {
    %c0 = arith.constant 0 : index
    %c0_0 = arith.constant 0 : index
    %0 = vector.load %arg1[%c0, %c0_0] : memref<8x128xbf16, #tpu.memory_space<vmem>>, vector<8x128xbf16>
    %c0_1 = arith.constant 0 : index
    %c0_2 = arith.constant 0 : index
    %1 = vector.load %arg2[%c0_1, %c0_2] : memref<128x128xbf16, #tpu.memory_space<vmem>>, vector<128x128xbf16>
    %cst = arith.constant dense<0.000000e+00> : vector<8x128xf32>
    %2 = tpu.matmul %0, %1, %cst {dimension_numbers = #tpu.dot_dimension_numbers<[1], [0], [0], [1], [0, 0, 1, 1], [], []>} : vector<8x128xbf16>, vector<128x128xbf16>, vector<8x128xf32> -> vector<8x128xf32>
    %c0_3 = arith.constant 0 : index
    %c0_4 = arith.constant 0 : index
    %3 = vector.load %arg3[%c0_3, %c0_4] : memref<1x128xbf16, #tpu.memory_space<vmem>>, vector<1x128xbf16>
    %4 = arith.extf %3 : vector<1x128xbf16> to vector<1x128xf32>
    %5 = vector.broadcast %4 : vector<1x128xf32> to vector<8x128xf32>
    %6 = arith.addf %2, %5 : vector<8x128xf32>
    %cst_5 = arith.constant 1.702000e+00 : f32
    %7 = vector.broadcast %cst_5 : f32 to vector<8x128xf32>
    %8 = arith.mulf %7, %6 : vector<8x128xf32>
    %9 = arith.negf %8 : vector<8x128xf32>
    %10 = math.exp %9 : vector<8x128xf32>
    %cst_6 = arith.constant 1.000000e+00 : f32
    %11 = vector.broadcast %cst_6 : f32 to vector<8x128xf32>
    %12 = arith.addf %11, %10 : vector<8x128xf32>
    %13 = arith.divf %11, %12 : vector<8x128xf32>
    %14 = arith.mulf %6, %13 : vector<8x128xf32>
    %15 = arith.truncf %14 : vector<8x128xf32> to vector<8x128xbf16>
    %c0_7 = arith.constant 0 : index
    %c0_8 = arith.constant 0 : index
    %16 = vector.load %arg4[%c0_7, %c0_8] : memref<128x128xbf16, #tpu.memory_space<vmem>>, vector<128x128xbf16>
    %cst_9 = arith.constant dense<0.000000e+00> : vector<8x128xf32>
    %17 = tpu.matmul %15, %16, %cst_9 {dimension_numbers = #tpu.dot_dimension_numbers<[1], [0], [0], [1], [0, 0, 1, 1], [], []>} : vector<8x128xbf16>, vector<128x128xbf16>, vector<8x128xf32> -> vector<8x128xf32>
    %c0_10 = arith.constant 0 : index
    %c0_11 = arith.constant 0 : index
    %18 = vector.load %arg5[%c0_10, %c0_11] : memref<1x128xbf16, #tpu.memory_space<vmem>>, vector<1x128xbf16>
    %19 = arith.extf %18 : vector<1x128xbf16> to vector<1x128xf32>
    %20 = vector.broadcast %19 : vector<1x128xf32> to vector<8x128xf32>
    %21 = arith.addf %17, %20 : vector<8x128xf32>
    %22 = arith.truncf %21 : vector<8x128xf32> to vector<8x128xbf16>
    %c0_12 = arith.constant 0 : index
    %c0_13 = arith.constant 0 : index
    %23 = vector.load %arg6[%c0_12, %c0_13] : memref<8x128xbf16, #tpu.memory_space<vmem>>, vector<8x128xbf16>
    tpu.vector_store %arg6[%c0_12, %c0_13], %22 {strides = array<i32>} : memref<8x128xbf16, #tpu.memory_space<vmem>>, vector<8x128xbf16>,
    return
  }
  func.func @transform_0(%arg0: i32) -> (i32, i32) {
    %c0_i32 = arith.constant 0 : i32
    %c0_i32_0 = arith.constant 0 : i32
    return %arg0, %c0_i32 : i32, i32
  }
  func.func @transform_1(%arg0: i32) -> (i32, i32) {
    %c0_i32 = arith.constant 0 : i32
    %c0_i32_0 = arith.constant 0 : i32
    %c0_i32_1 = arith.constant 0 : i32
    return %c0_i32, %c0_i32_0 : i32, i32
  }
  func.func @transform_2(%arg0: i32) -> (i32, i32) {
    %c0_i32 = arith.constant 0 : i32
    %c0_i32_0 = arith.constant 0 : i32
    %c0_i32_1 = arith.constant 0 : i32
    return %c0_i32, %c0_i32_0 : i32, i32
  }
  func.func @transform_3(%arg0: i32) -> (i32, i32) {
    %c0_i32 = arith.constant 0 : i32
    %c0_i32_0 = arith.constant 0 : i32
    %c0_i32_1 = arith.constant 0 : i32
    return %c0_i32, %c0_i32_0 : i32, i32
  }
  func.func @transform_4(%arg0: i32) -> (i32, i32) {
    %c0_i32 = arith.constant 0 : i32
    %c0_i32_0 = arith.constant 0 : i32
    %c0_i32_1 = arith.constant 0 : i32
    return %c0_i32, %c0_i32_0 : i32, i32
  }
  func.func @transform_5(%arg0: i32) -> (i32, i32) {
    %c0_i32 = arith.constant 0 : i32
    %c0_i32_0 = arith.constant 0 : i32
    return %arg0, %c0_i32 : i32, i32
  }
}

</mosaic_0001>

<llo_original>
// kernel: tpu_custom_call.1
$region0: #{tpu_custom_call.1}
  #allocation0 [shape = 'u32[]', space=smem, size = 0x4, offset = 0x4, fixed_abs, tag = 'smem constant byte address 0x4 - core index']
  #allocation1 [shape = 'u32[72,128]{1,0:T(1,128)}', space=vmem, size = 0x9000, scoped, tag = 'internal scratch']
  %s0 = inlined_call_operand.hbm [shape: bf16[16,128], index: 0, kind: input, shape index: {}]
  %s1 = inlined_call_operand.hbm [shape: bf16[128,128], index: 1, kind: input, shape index: {}]
  %s2 = inlined_call_operand.vmem [shape: bf16[1,128], index: 2, kind: input, shape index: {}]
  %s3 = inlined_call_operand.hbm [shape: bf16[128,128], index: 3, kind: input, shape index: {}]
  %s4 = inlined_call_operand.vmem [shape: bf16[1,128], index: 4, kind: input, shape index: {}]
  %s5 = inlined_call_operand.hbm [shape: bf16[16,128], index: 5, kind: output, shape index: {}]
  %s6 = sld [smem:[#allocation0]]
  $region65: #{tpu_custom_call.1} parent=0
    _
  %s8 = ssub.s32 1, %s6
  %s9 = scalar_select 0, %s8, %s6
  $region1: #{tpu_custom_call.1} parent=0
    #allocation2 [shape = 'u8[4096]{0}', space=vmem, size = 0x1000, scoped, tag = 'input window, operand 0']
    #allocation3 [shape = 's32[2]{0}', space=sflag, size = 0x8, scoped, tag = 'scoped memory for tpu_custom_call.1']
    #allocation4 [shape = 's32[2]{0}', space=sflag, size = 0x8, scoped, tag = 'scoped memory for tpu_custom_call.1']
    #allocation5 [shape = 'u8[32768]{0}', space=vmem, size = 0x8000, scoped, tag = 'input window, operand 1, single buffered']
    #allocation6 [shape = 's32[1]{0}', space=sflag, size = 0x4, scoped, tag = 'scoped memory for tpu_custom_call.1']
    #allocation7 [shape = 'u8[32768]{0}', space=vmem, size = 0x8000, scoped, tag = 'input window, operand 3, single buffered']
    #allocation8 [shape = 'u8[4096]{0}', space=vmem, size = 0x1000, scoped, tag = 'output window, operand 0']
    %10 = vsyncpa [#allocation3], 0
    %s11 = scalar_lea.sflag [#allocation3], 1
    %12 = vsyncpa %s11, 0
    %13 = vsyncpa [#allocation6], 0
    %14 = vsyncpa [#allocation4], 0
    %s15 = scalar_lea.sflag [#allocation4], 1
    %16 = vsyncpa %s15, 0
    loop: start=0, step=1, limit=4
    $region2: #{tpu_custom_call.1} parent=1 // loop_pre_header
      _
    $region3: #{tpu_custom_call.1} parent=1 // loop_header
      %s18 = sphi 0, %s22
      %p19 = scmp.ge.s32.totalorder %s18, 4
      %s28 = sphi 0, %s30
      %s31 = sphi 0, %s28
      %s32 = sphi 0, %s31
      %s48 = sphi 0, %s32
      %s52 = sphi 0, %s52
      %s54 = sphi 0, %s52
      %s55 = sphi 0, %s54
      %s69 = sphi 0, %s55
      %s73 = sphi 0, %s73
      %s75 = sphi 0, %s73
      %s76 = sphi 0, %s75
      %s90 = sphi 0, %s76
      %s94 = sphi 0, %s94
      %s96 = sphi 0, %s94
      %s97 = sphi 0, %s96
      %s111 = sphi 0, %s97
      %s115 = sphi 0, %s115
      %s117 = sphi 0, %s115
      %s118 = sphi 0, %s117
      %s132 = sphi 0, %s118
      %s138 = sphi 0, %s140
      %s141 = sphi 0, %s138
      %s142 = sphi 0, %s141
      %s158 = sphi 0, %s142
    $region4: #{tpu_custom_call.1} parent=1 // loop_header_branch
      %21 = sbr.rel (%p19) target = $region8
    $region5: #{tpu_custom_call.1} parent=1 // loop_body
      %s23 = ssub.s32 %s18, 1
      %s24 = ssub.s32 %s18, 2
      %s25 = sadd.s32 %s18, 1
      %s26 = ssub.s32 %s18, %s25
      %p27 = scmp.eq.s32.totalorder %s26, 0
      %s29 = sadd.s32 %s28, 1
      %s30 = scalar_select %p27, %s28, %s29
      %p33 = pneg %p27
      %p34 = scmp.eq.s32.totalorder %s18, 1
      %p35 = por %p33, %p34
      %p36 = scmp.ne.s32.totalorder %s28, %s31
      %p37 = scmp.eq.s32.totalorder %s18, 0
      %p38 = por %p36, %p37
      %p39 = scmp.ne.s32.totalorder %s28, %s31
      %p40 = scmp.eq.s32.totalorder %s23, 1
      %p41 = por %p39, %p40
      %p42 = scmp.ne.s32.totalorder %s31, %s32
      %p43 = scmp.eq.s32.totalorder %s23, 0
      %p44 = por %p42, %p43
      %p45 = scmp.ne.s32.totalorder %s31, %s32
      %p46 = scmp.eq.s32.totalorder %s24, 1
      %p47 = por %p45, %p46
      %p49 = scmp.ne.s32.totalorder %s32, %s48
      %p50 = scmp.eq.s32.totalorder %s24, 0
      %p51 = por %p49, %p50
      %s53 = sadd.s32 %s52, 1
      %p56 = scmp.eq.s32.totalorder %s18, 1
      %p57 = scmp.ne.s32.totalorder %s52, %s54
      %p58 = scmp.eq.s32.totalorder %s18, 0
      %p59 = por %p57, %p58
      %p60 = scmp.ne.s32.totalorder %s52, %s54
      %p61 = scmp.eq.s32.totalorder %s23, 1
      %p62 = por %p60, %p61
      %p63 = scmp.ne.s32.totalorder %s54, %s55
      %p64 = scmp.eq.s32.totalorder %s23, 0
      %p65 = por %p63, %p64
      %p66 = scmp.ne.s32.totalorder %s54, %s55
      %p67 = scmp.eq.s32.totalorder %s24, 1
      %p68 = por %p66, %p67
      %p70 = scmp.ne.s32.totalorder %s55, %s69
      %p71 = scmp.eq.s32.totalorder %s24, 0
      %p72 = por %p70, %p71
      %s74 = sadd.s32 %s73, 1
      %p77 = scmp.eq.s32.totalorder %s18, 1
      %p78 = scmp.ne.s32.totalorder %s73, %s75
      %p79 = scmp.eq.s32.totalorder %s18, 0
      %p80 = por %p78, %p79
      %p81 = scmp.ne.s32.totalorder %s73, %s75
      %p82 = scmp.eq.s32.totalorder %s23, 1
      %p83 = por %p81, %p82
      %p84 = scmp.ne.s32.totalorder %s75, %s76
      %p85 = scmp.eq.s32.totalorder %s23, 0
      %p86 = por %p84, %p85
      %p87 = scmp.ne.s32.totalorder %s75, %s76
      %p88 = scmp.eq.s32.totalorder %s24, 1
      %p89 = por %p87, %p88
      %p91 = scmp.ne.s32.totalorder %s76, %s90
      %p92 = scmp.eq.s32.totalorder %s24, 0
      %p93 = por %p91, %p92
      %s95 = sadd.s32 %s94, 1
      %p98 = scmp.eq.s32.totalorder %s18, 1
      %p99 = scmp.ne.s32.totalorder %s94, %s96
      %p100 = scmp.eq.s32.totalorder %s18, 0
      %p101 = por %p99, %p100
      %p102 = scmp.ne.s32.totalorder %s94, %s96
      %p103 = scmp.eq.s32.totalorder %s23, 1
      %p104 = por %p102, %p103
      %p105 = scmp.ne.s32.totalorder %s96, %s97
      %p106 = scmp.eq.s32.totalorder %s23, 0
      %p107 = por %p105, %p106
      %p108 = scmp.ne.s32.totalorder %s96, %s97
      %p109 = scmp.eq.s32.totalorder %s24, 1
      %p110 = por %p108, %p109
      %p112 = scmp.ne.s32.totalorder %s97, %s111
      %p113 = scmp.eq.s32.totalorder %s24, 0
      %p114 = por %p112, %p113
      %s116 = sadd.s32 %s115, 1
      %p119 = scmp.eq.s32.totalorder %s18, 1
      %p120 = scmp.ne.s32.totalorder %s115, %s117
      %p121 = scmp.eq.s32.totalorder %s18, 0
      %p122 = por %p120, %p121
      %p123 = scmp.ne.s32.totalorder %s115, %s117
      %p124 = scmp.eq.s32.totalorder %s23, 1
      %p125 = por %p123, %p124
      %p126 = scmp.ne.s32.totalorder %s117, %s118
      %p127 = scmp.eq.s32.totalorder %s23, 0
      %p128 = por %p126, %p127
      %p129 = scmp.ne.s32.totalorder %s117, %s118
      %p130 = scmp.eq.s32.totalorder %s24, 1
      %p131 = por %p129, %p130
      %p133 = scmp.ne.s32.totalorder %s118, %s132
      %p134 = scmp.eq.s32.totalorder %s24, 0
      %p135 = por %p133, %p134
      %s136 = ssub.s32 %s18, %s25
      %p137 = scmp.eq.s32.totalorder %s136, 0
      %s139 = sadd.s32 %s138, 1
      %s140 = scalar_select %p137, %s138, %s139
      %p143 = pneg %p137
      %p144 = scmp.eq.s32.totalorder %s18, 1
      %p145 = por %p143, %p144
      %p146 = scmp.ne.s32.totalorder %s138, %s141
      %p147 = scmp.eq.s32.totalorder %s18, 0
      %p148 = por %p146, %p147
      %p149 = scmp.ne.s32.totalorder %s138, %s141
      %p150 = scmp.eq.s32.totalorder %s23, 1
      %p151 = por %p149, %p150
      %p152 = scmp.ne.s32.totalorder %s141, %s142
      %p153 = scmp.eq.s32.totalorder %s23, 0
      %p154 = por %p152, %p153
      %p155 = scmp.ne.s32.totalorder %s141, %s142
      %p156 = scmp.eq.s32.totalorder %s24, 1
      %p157 = por %p155, %p156
      %p159 = scmp.ne.s32.totalorder %s142, %s158
      %p160 = scmp.eq.s32.totalorder %s24, 0
      %p161 = por %p159, %p160
      %p162 = scmp.le.s32.totalorder 1, %s18
      %p163 = scmp.lt.s32.totalorder %s18, 3
      %p164 = pnand %p162, %p163
      %p165 = pneg %p164
      // Predicated region
      $region9: #{tpu_custom_call.1} parent=5 // pred_check
        _
      $region10: #{tpu_custom_call.1} parent=5 // pred_check_branch
        %167 = sbr.rel (%p164) target = $region12
      $region11: #{tpu_custom_call.1} parent=5 // pred_region
        %s168 = ssub.s32 %s18, 1
        // Predicated region
        $region13: #{tpu_custom_call.1} parent=11 // pred_check
          %p169 = pneg %p65
        $region14: #{tpu_custom_call.1} parent=11 // pred_check_branch
          %171 = sbr.rel (%p169) target = $region16
        $region15: #{tpu_custom_call.1} parent=11 // pred_region
          %173 = vsyncadd [#allocation6], 0
          %s174 = sshll.u32 %s1, 4
          %s175 = int_to_ptr.hbm [resolvable:$true] %s174
          %s176 = sshll.u32 [#allocation5], 4
          %s177 = int_to_ptr.vmem [resolvable:$true] %s176
          %182 = dma.hbm_to_vmem [thread:$0]  %s175, 1024, %s177, [#allocation6], 64, 64, 4
        $region16: #{tpu_custom_call.1} parent=11 // pred_fallthru
          _
        // Predicated region
        $region17: #{tpu_custom_call.1} parent=11 // pred_check
          %p183 = pneg %p86
        $region18: #{tpu_custom_call.1} parent=11 // pred_check_branch
          %185 = sbr.rel (%p183) target = $region20
        $region19: #{tpu_custom_call.1} parent=11 // pred_region
          _
        $region20: #{tpu_custom_call.1} parent=11 // pred_fallthru
          _
        // Predicated region
        $region21: #{tpu_custom_call.1} parent=11 // pred_check
          %p186 = pneg %p107
        $region22: #{tpu_custom_call.1} parent=11 // pred_check_branch
          %188 = sbr.rel (%p186) target = $region24
        $region23: #{tpu_custom_call.1} parent=11 // pred_region
          %190 = vsyncadd [#allocation6], 0
          %s191 = sshll.u32 %s3, 4
          %s192 = int_to_ptr.hbm [resolvable:$true] %s191
          %s193 = sshll.u32 [#allocation7], 4
          %s194 = int_to_ptr.vmem [resolvable:$true] %s193
          %199 = dma.hbm_to_vmem [thread:$0]  %s192, 1024, %s194, [#allocation6], 64, 64, 4
        $region24: #{tpu_custom_call.1} parent=11 // pred_fallthru
          _
        // Predicated region
        $region25: #{tpu_custom_call.1} parent=11 // pred_check
          %p200 = pneg %p128
        $region26: #{tpu_custom_call.1} parent=11 // pred_check_branch
          %202 = sbr.rel (%p200) target = $region28
        $region27: #{tpu_custom_call.1} parent=11 // pred_region
          _
        $region28: #{tpu_custom_call.1} parent=11 // pred_fallthru
          _
      $region12: #{tpu_custom_call.1} parent=5 // pred_fallthru
        _
      %p203 = scmp.lt.s32.totalorder %s18, 2
      // Predicated region
      $region29: #{tpu_custom_call.1} parent=5 // pred_check
        %p204 = pneg %p203
      $region30: #{tpu_custom_call.1} parent=5 // pred_check_branch
        %206 = sbr.rel (%p204) target = $region32
      $region31: #{tpu_custom_call.1} parent=5 // pred_region
        // Predicated region
        $region33: #{tpu_custom_call.1} parent=31 // pred_check
          %p207 = pneg %p38
        $region34: #{tpu_custom_call.1} parent=31 // pred_check_branch
          %209 = sbr.rel (%p207) target = $region36
        $region35: #{tpu_custom_call.1} parent=31 // pred_region
          %s210 = sand.u32 %s28, 1
          %s211 = scalar_lea.sflag [#allocation3], %s210
          %s212 = sand.u32 %s28, 1
          %s213 = smul.addr %s212, 4
          %s214 = scalar_lea.vmem [#allocation2], %s213
          %216 = vsyncadd %s211, 0
          %s217 = smul.addr %s18, 4
          %s218 = scalar_lea.hbm %s0, %s217
          %s220 = sshll.u32 %s218, 4
          %s221 = int_to_ptr.hbm [resolvable:$true] %s220
          %s222 = sshll.u32 %s214, 4
          %s223 = int_to_ptr.vmem [resolvable:$true] %s222
          %225 = dma.hbm_to_vmem [thread:$0]  %s221, 64, %s223, %s211
        $region36: #{tpu_custom_call.1} parent=31 // pred_fallthru
          _
      $region32: #{tpu_custom_call.1} parent=5 // pred_fallthru
        _
      %p226 = scmp.le.s32.totalorder 1, %s18
      %p227 = scmp.lt.s32.totalorder %s18, 3
      %p228 = pnand %p226, %p227
      %p229 = pneg %p228
      // Predicated region
      $region37: #{tpu_custom_call.1} parent=5 // pred_check
        _
      $region38: #{tpu_custom_call.1} parent=5 // pred_check_branch
        %231 = sbr.rel (%p228) target = $region40
      $region39: #{tpu_custom_call.1} parent=5 // pred_region
        %s232 = ssub.s32 %s18, 1
        %s233 = sand.u32 %s31, 1
        %s234 = scalar_lea.sflag [#allocation3], %s233
        %s235 = sand.u32 %s31, 1
        %s236 = smul.addr %s235, 4
        %s237 = scalar_lea.vmem [#allocation2], %s236
        // Predicated region
        $region41: #{tpu_custom_call.1} parent=39 // pred_check
          %p238 = pneg %p44
        $region42: #{tpu_custom_call.1} parent=39 // pred_check_branch
          %240 = sbr.rel (%p238) target = $region44
        $region43: #{tpu_custom_call.1} parent=39 // pred_region
          %242 = dma.done %s234, 64
        $region44: #{tpu_custom_call.1} parent=39 // pred_fallthru
          _
        // Predicated region
        $region45: #{tpu_custom_call.1} parent=39 // pred_check
          %p243 = pneg %p65
        $region46: #{tpu_custom_call.1} parent=39 // pred_check_branch
          %245 = sbr.rel (%p243) target = $region48
        $region47: #{tpu_custom_call.1} parent=39 // pred_region
          %247 = dma.done [#allocation6], 1024
        $region48: #{tpu_custom_call.1} parent=39 // pred_fallthru
          _
        // Predicated region
        $region49: #{tpu_custom_call.1} parent=39 // pred_check
          %p248 = pneg %p107
        $region50: #{tpu_custom_call.1} parent=39 // pred_check_branch
          %250 = sbr.rel (%p248) target = $region52
        $region51: #{tpu_custom_call.1} parent=39 // pred_region
          %252 = dma.done [#allocation6], 1024
        $region52: #{tpu_custom_call.1} parent=39 // pred_fallthru
          _
        %s253 = sand.u32 %s31, 1
        %s254 = scalar_lea.sflag [#allocation3], %s253
        %s255 = sand.u32 %s31, 1
        %s256 = smul.addr %s255, 4
        %s257 = scalar_lea.vmem [#allocation2], %s256
        %p258 = pneg %p44
        %p259 = pneg %p41
        %p260 = pneg %p65
        %p261 = pneg %p62
        %p262 = pneg %p86
        %p263 = pneg %p83
        %p264 = pneg %p107
        %p265 = pneg %p104
        %p266 = pneg %p128
        %p267 = pneg %p125
        %p268 = pneg %p154
        %p269 = pneg %p151
        %s270 = sand.u32 %s141, 1
        %s271 = scalar_lea.sflag [#allocation4], %s270
        %s272 = sand.u32 %s141, 1
        %s273 = smul.addr %s272, 4
        %s274 = scalar_lea.vmem [#allocation8], %s273
        %v275 = vld [vmem:[%s237] sm:$0xf]
        %v276 = vld [vmem:[#allocation5] sm:$0xf]
        %v277 = vld [vmem:[#allocation5 + $0x4] sm:$0xf]
        %v278 = vld [vmem:[#allocation5 + $0x8] sm:$0xf]
        %v279 = vld [vmem:[#allocation5 + $0xc] sm:$0xf]
        %v280 = vld [vmem:[#allocation5 + $0x10] sm:$0xf]
        %v281 = vld [vmem:[#allocation5 + $0x14] sm:$0xf]
        %v282 = vld [vmem:[#allocation5 + $0x18] sm:$0xf]
        %v283 = vld [vmem:[#allocation5 + $0x1c] sm:$0xf]
        %v284 = vld [vmem:[#allocation5 + $0x20] sm:$0xf]
        %v285 = vld [vmem:[#allocation5 + $0x24] sm:$0xf]
        %v286 = vld [vmem:[#allocation5 + $0x28] sm:$0xf]
        %v287 = vld [vmem:[#allocation5 + $0x2c] sm:$0xf]
        %v288 = vld [vmem:[#allocation5 + $0x30] sm:$0xf]
        %v289 = vld [vmem:[#allocation5 + $0x34] sm:$0xf]
        %v290 = vld [vmem:[#allocation5 + $0x38] sm:$0xf]
        %v291 = vld [vmem:[#allocation5 + $0x3c] sm:$0xf]
        %v292 = vld [vmem:[%s2] sm:$0x1]
        %v293 = vunpack.c.l.bf16 %v292
        %v294 = vperm.slane %v293, 0
        %v311 = vunpack.c.l.b16 %v276
        %v312 = vunpack.c.l.b16 %v277
        %v313 = vunpack.c.l.b16 %v278
        %v314 = vunpack.c.l.b16 %v279
        %v315 = vunpack.c.l.b16 %v280
        %v316 = vunpack.c.l.b16 %v281
        %v317 = vunpack.c.l.b16 %v282
        %v318 = vunpack.c.l.b16 %v283
        %v319 = vunpack.c.l.b16 %v284
        %v320 = vunpack.c.l.b16 %v285
        %v321 = vunpack.c.l.b16 %v286
        %v322 = vunpack.c.l.b16 %v287
        %v323 = vunpack.c.l.b16 %v288
        %v324 = vunpack.c.l.b16 %v289
        %v325 = vunpack.c.l.b16 %v290
        %v326 = vunpack.c.l.b16 %v291
        %v327 = vpack.c.b16 %v312, %v311
        %v328 = vpack.c.b16 %v314, %v313
        %v329 = vpack.c.b16 %v316, %v315
        %v330 = vpack.c.b16 %v318, %v317
        %v331 = vpack.c.b16 %v320, %v319
        %v332 = vpack.c.b16 %v322, %v321
        %v333 = vpack.c.b16 %v324, %v323
        %v334 = vpack.c.b16 %v326, %v325
        %343 = vmatpush.bf16.msra.mxu0 %v334
        %344 = vmatpush.bf16.msra.mxu0 %v333
        %345 = vmatpush.bf16.msra.mxu0 %v332
        %346 = vmatpush.bf16.msra.mxu0 %v331
        %347 = vmatpush.bf16.msra.mxu0 %v330
        %348 = vmatpush.bf16.msra.mxu0 %v329
        %349 = vmatpush.bf16.msra.mxu0 %v328
        %350 = vmatpush.bf16.msra.mxu0 %v327
        %351 = vmatmul.bf16.gmra.mxu0 %v275
        %v352 = vpop.f32.mrf.mxu0
        %v353 = vadd.f32 %v294, %v352
        %v354 = vpop.f32.mrf.mxu0
        %355 = vdwg.mxu0
        %v356 = vmul.f32 %v353, 1.702
        %v357 = vxor.u32 %v356, 2147483648
        %v358 = vmul.f32 %v357, 1.442695
        %v359 = vpow.pop %v358
        %v360 = vadd.f32 %v359, 1.0
        %v361 = vrcp.pop %v360
        %v362 = vmul.f32 %v360, %v361
        %v363 = vsub.f32 1.0, %v362
        %v364 = vmul.f32 %v361, %v363
        %v365 = vadd.f32 %v361, %v364
        %vm366 = vweird.f32 %v360
        %vm367 = vweird.f32 %v361
        %vm368 = vmor %vm366, %vm367
        %v369 = vsel %vm368, %v361, %v365
        %v370 = vand.u32 2147483647, %v360
        %vm371 = vcmp.eq.f32.partialorder %v370, 8.507059e+37
        %v372 = vand.u32 %v360, 2147483648
        %v373 = vor.u32 1.1754944e-38, %v372
        %v374 = vsel %vm371, %v373, %v369
        %v375 = vmul.f32 1.0, %v374
        %v376 = vmul.f32 %v353, %v375
        %v377 = vpack.c.bf16 %v376, %v376
        %v378 = vld [vmem:[#allocation7] sm:$0xf]
        %v379 = vld [vmem:[#allocation7 + $0x4] sm:$0xf]
        %v380 = vld [vmem:[#allocation7 + $0x8] sm:$0xf]
        %v381 = vld [vmem:[#allocation7 + $0xc] sm:$0xf]
        %v382 = vld [vmem:[#allocation7 + $0x10] sm:$0xf]
        %v383 = vld [vmem:[#allocation7 + $0x14] sm:$0xf]
        %v384 = vld [vmem:[#allocation7 + $0x18] sm:$0xf]
        %v385 = vld [vmem:[#allocation7 + $0x1c] sm:$0xf]
        %v386 = vld [vmem:[#allocation7 + $0x20] sm:$0xf]
        %v387 = vld [vmem:[#allocation7 + $0x24] sm:$0xf]
        %v388 = vld [vmem:[#allocation7 + $0x28] sm:$0xf]
        %v389 = vld [vmem:[#allocation7 + $0x2c] sm:$0xf]
        %v390 = vld [vmem:[#allocation7 + $0x30] sm:$0xf]
        %v391 = vld [vmem:[#allocation7 + $0x34] sm:$0xf]
        %v392 = vld [vmem:[#allocation7 + $0x38] sm:$0xf]
        %v393 = vld [vmem:[#allocation7 + $0x3c] sm:$0xf]
        %v394 = vld [vmem:[%s4] sm:$0x1]
        %v395 = vunpack.c.l.bf16 %v394
        %v396 = vperm.slane %v395, 0
        %v413 = vunpack.c.l.b16 %v378
        %v414 = vunpack.c.l.b16 %v379
        %v415 = vunpack.c.l.b16 %v380
        %v416 = vunpack.c.l.b16 %v381
        %v417 = vunpack.c.l.b16 %v382
        %v418 = vunpack.c.l.b16 %v383
        %v419 = vunpack.c.l.b16 %v384
        %v420 = vunpack.c.l.b16 %v385
        %v421 = vunpack.c.l.b16 %v386
        %v422 = vunpack.c.l.b16 %v387
        %v423 = vunpack.c.l.b16 %v388
        %v424 = vunpack.c.l.b16 %v389
        %v425 = vunpack.c.l.b16 %v390
        %v426 = vunpack.c.l.b16 %v391
        %v427 = vunpack.c.l.b16 %v392
        %v428 = vunpack.c.l.b16 %v393
        %v429 = vpack.c.b16 %v414, %v413
        %v430 = vpack.c.b16 %v416, %v415
        %v431 = vpack.c.b16 %v418, %v417
        %v432 = vpack.c.b16 %v420, %v419
        %v433 = vpack.c.b16 %v422, %v421
        %v434 = vpack.c.b16 %v424, %v423
        %v435 = vpack.c.b16 %v426, %v425
        %v436 = vpack.c.b16 %v428, %v427
        %445 = vmatpush.bf16.msra.mxu0 %v436
        %446 = vmatpush.bf16.msra.mxu0 %v435
        %447 = vmatpush.bf16.msra.mxu0 %v434
        %448 = vmatpush.bf16.msra.mxu0 %v433
        %449 = vmatpush.bf16.msra.mxu0 %v432
        %450 = vmatpush.bf16.msra.mxu0 %v431
        %451 = vmatpush.bf16.msra.mxu0 %v430
        %452 = vmatpush.bf16.msra.mxu0 %v429
        %453 = vmatmul.bf16.gmra.mxu0 %v377
        %v454 = vpop.f32.mrf.mxu0
        %v455 = vadd.f32 %v396, %v454
        %v456 = vpop.f32.mrf.mxu0
        %457 = vdwg.mxu0
        %v458 = vpack.c.bf16 %v455, %v455
        %459 = vst [vmem:[%s274] sm:$0xf] %v458
        %s460 = sand.u32 %s141, 1
        %s461 = scalar_lea.sflag [#allocation4], %s460
        %s462 = sand.u32 %s141, 1
        %s463 = smul.addr %s462, 4
        %s464 = scalar_lea.vmem [#allocation8], %s463
        // Predicated region
        $region53: #{tpu_custom_call.1} parent=39 // pred_check
          %p465 = pneg %p151
        $region54: #{tpu_custom_call.1} parent=39 // pred_check_branch
          %467 = sbr.rel (%p465) target = $region56
        $region55: #{tpu_custom_call.1} parent=39 // pred_region
          %469 = vsyncadd %s461, 0
          %s470 = smul.addr %s23, 4
          %s471 = scalar_lea.hbm %s5, %s470
          %s473 = sshll.u32 %s464, 4
          %s474 = int_to_ptr.vmem [resolvable:$true] %s473
          %s475 = sshll.u32 %s471, 4
          %s476 = int_to_ptr.hbm [resolvable:$true] %s475
          %478 = dma.vmem_to_hbm [thread:$0]  %s474, 64, %s476, %s461
        $region56: #{tpu_custom_call.1} parent=39 // pred_fallthru
          _
      $region40: #{tpu_custom_call.1} parent=5 // pred_fallthru
        _
      %p479 = scmp.le.s32.totalorder 2, %s18
      // Predicated region
      $region57: #{tpu_custom_call.1} parent=5 // pred_check
        %p480 = pneg %p479
      $region58: #{tpu_custom_call.1} parent=5 // pred_check_branch
        %482 = sbr.rel (%p480) target = $region60
      $region59: #{tpu_custom_call.1} parent=5 // pred_region
        %s483 = ssub.s32 %s18, 2
        // Predicated region
        $region61: #{tpu_custom_call.1} parent=59 // pred_check
          %p484 = pneg %p157
        $region62: #{tpu_custom_call.1} parent=59 // pred_check_branch
          %486 = sbr.rel (%p484) target = $region64
        $region63: #{tpu_custom_call.1} parent=59 // pred_region
          %s487 = sand.u32 %s142, 1
          %s488 = scalar_lea.sflag [#allocation4], %s487
          %s489 = sand.u32 %s142, 1
          %s490 = smul.addr %s489, 4
          %s491 = scalar_lea.vmem [#allocation8], %s490
          %493 = dma.done %s488, 64
        $region64: #{tpu_custom_call.1} parent=59 // pred_fallthru
          _
      $region60: #{tpu_custom_call.1} parent=5 // pred_fallthru
        _
    $region6: #{tpu_custom_call.1} parent=1 // loop_footer
      %s22 = sadd.s32 1, %s18
    $region7: #{tpu_custom_call.1} parent=1 // loop_footer_branch
      %17 = sbr.rel target = $region3
    $region8: #{tpu_custom_call.1} parent=1 // loop_exit
      _
    %494 = vsyncpa [#allocation3], 1
    %s495 = scalar_lea.sflag [#allocation3], 1
    %496 = vsyncpa %s495, 1
    %497 = vsyncpa [#allocation6], 1
    %498 = vsyncpa [#allocation4], 1
    %s499 = scalar_lea.sflag [#allocation4], 1
    %500 = vsyncpa %s499, 1

</llo_original>
